<compile_context>
chip_gen: v7x
topology: tpu7x:2x2x1
jax: 0.10.0
libtpu: 0.0.40
codegen_flags: <defaults>
</compile_context>

<pallas_src>
import functools
import math

import jax
import jax.numpy as jnp
from jax.experimental import pallas as pl
from jax.experimental.pallas import tpu as pltpu


def _round_up(x, m):
    return ((x + m - 1) // m) * m


def _mrl_fused_kernel(x_ref, w_ref, b_ref, o_ref):
    # x_ref: [bm, D] f32 (cast to bf16 here -> single HBM read of x),
    # w_ref: [D, N] bf16, b_ref: [1, N] f32, o_ref: [bm, N] f32.
    x_bf = x_ref[...].astype(jnp.bfloat16)
    o_ref[...] = (
        jnp.dot(x_bf, w_ref[...], preferred_element_type=jnp.float32)
        + b_ref[...]
    )


def _pick_block_m(batch):
    """8-aligned batch tile, <=512 rows, >=2 grid steps when possible (v7x dual TC)."""
    b8 = _round_up(batch, 8)
    if b8 <= 8:
        return 8
    n_tiles = 2 if b8 <= 1024 else pl.cdiv(b8, 512)
    return _round_up(pl.cdiv(b8, n_tiles), 8)


def mrl_fused_forward(x, w_all, b_all):
    """Fused multi-head linear: x[B, D] @ w_all[D, N] + b_all[1, N] -> [B, N] f32."""
    B, D = x.shape
    _, N = w_all.shape
    block_m = _pick_block_m(B)
    B_pad = block_m * pl.cdiv(B, block_m)
    if B_pad != B:
        # Explicit pad (zeros) instead of partial-block OOB on the batch dim.
        x = jnp.pad(x, ((0, B_pad - B), (0, 0)))
    grid = (B_pad // block_m,)
    out = pl.pallas_call(
        _mrl_fused_kernel,
        out_shape=jax.ShapeDtypeStruct((B_pad, N), jnp.float32),
        grid_spec=pltpu.PrefetchScalarGridSpec(
            num_scalar_prefetch=0,
            grid=grid,
            in_specs=[
                pl.BlockSpec((block_m, D), lambda i: (i, 0)),  # x tile
                pl.BlockSpec((D, N), lambda i: (0, 0)),        # packed weights (grid-invariant)
                pl.BlockSpec((1, N), lambda i: (0, 0)),        # packed bias (grid-invariant)
            ],
            out_specs=pl.BlockSpec((block_m, N), lambda i: (i, 0)),
        ),
        compiler_params=pltpu.CompilerParams(
            dimension_semantics=("parallel",),
        ),
    )(x, w_all, b_all)
    return out[:B] if B_pad != B else out


@functools.partial(jax.jit, static_argnames=("num_classes", "n_heads"))
def _mrl_apply(x, w_all, b_all, *, num_classes, n_heads):
    out = mrl_fused_forward(x, w_all, b_all)
    # Heads are packed contiguously in the first n_heads*num_classes lanes.
    return [out[:, h * num_classes:(h + 1) * num_classes] for h in range(n_heads)]


class MRLLayerPallas:
    """JAX/Pallas port of MRLLayer: nested-granularity classification heads."""

    def __init__(self, num_classes, m=(16, 64, 128, 256, 512, 768), key=None):
        if key is None:
            key = jax.random.PRNGKey(0)
        self.m = tuple(m)
        self.num_classes = num_classes
        self.max_dim = max(self.m)
        self.n_heads = len(self.m)
        # Dense packing: all heads side by side, padded to a multiple of 128 lanes.
        n_real = self.n_heads * num_classes
        self.n_pad = max(128, _round_up(n_real, 128))

        self.params = {}  # original-layout f32 params (reference / export)
        w_all = jnp.zeros((self.max_dim, self.n_pad), dtype=jnp.float32)
        b_all = jnp.zeros((self.n_pad,), dtype=jnp.float32)
        for h, d in enumerate(self.m):
            key, wk = jax.random.split(key)
            # xavier_uniform_ on weight of shape [num_classes, d]:
            # bound = sqrt(6 / (fan_in + fan_out)) = sqrt(6 / (d + num_classes))
            bound = math.sqrt(6.0 / (d + num_classes))
            w = jax.random.uniform(
                wk, (num_classes, d), dtype=jnp.float32, minval=-bound, maxval=bound
            )
            b = jnp.zeros((num_classes,), dtype=jnp.float32)
            self.params[d] = (w, b)

            col = h * num_classes
            # Zero-padded W^T block: rows d..max_dim are 0, so x[:, :d] truncation
            # is reproduced exactly by the full-width matmul.
            w_all = w_all.at[:d, col:col + num_classes].set(w.T)
            b_all = b_all.at[col:col + num_classes].set(b)

        self.w_all = w_all.astype(jnp.bfloat16)   # [max_dim, n_pad] bf16 (MXU)
        self.b_all = b_all.reshape(1, -1)          # [1, n_pad] f32

    def __call__(self, x):
        # x: [batch, max_dim] f32
        return _mrl_apply(
            x, self.w_all, self.b_all,
            num_classes=self.num_classes, n_heads=self.n_heads,
        )


if __name__ == "__main__":
    key = jax.random.PRNGKey(0)
    key, xk = jax.random.split(key)

    batch = 4
    num_classes = 10
    m = (16, 64, 128, 256, 512, 768)
    max_dim = max(m)

    x = jax.random.normal(xk, (batch, max_dim), dtype=jnp.float32)

    layer = MRLLayerPallas(num_classes, m=m, key=key)
    logits = layer(x)
    logits = [jax.block_until_ready(l) for l in logits]

    ok = True
    x_bf = x.astype(jnp.bfloat16)
    for d, out in zip(m, logits):
        w, b = layer.params[d]
        if out.shape != (batch, num_classes):
            ok = False

        # Tight check vs. a bf16-input / f32-accumulate reference (kernel numerics).
        ref_bf = (
            jnp.dot(
                x_bf[:, :d], w.T.astype(jnp.bfloat16),
                preferred_element_type=jnp.float32,
            )
            + b
        )
        if not jnp.allclose(out, ref_bf, atol=1e-2, rtol=1e-2):
            ok = False

        # Loose check vs. the full-f32 PyTorch-equivalent reference
        # (bf16 matmul gives ~1e-2 relative differences on logits).
        ref_f32 = x[:, :d] @ w.T + b
        if not jnp.allclose(out, ref_f32, atol=2.5e-1, rtol=5e-2):
            ok = False

    if ok:
        print("KERNEL_OK")
    else:
        print("KERNEL_MISMATCH")
</pallas_src>

<mosaic_0001>
module attributes {stable_mosaic.version = 11 : i64} {
  func.func @_mrl_fused_kernel(%arg0: i32, %arg1: memref<8x768xf32, #tpu.memory_space<vmem>>, %arg2: memref<768x128xbf16, #tpu.memory_space<vmem>>, %arg3: memref<1x128xf32, #tpu.memory_space<vmem>>, %arg4: memref<8x128xf32, #tpu.memory_space<vmem>>) attributes {dimension_semantics = [#tpu.dimension_semantics<parallel>], iteration_bounds = array<i64: 1>, scalar_prefetch = 0 : i64, scratch_operands = 0 : i64, tpu.core_type = #tpu.core_type<tc>, window_params = [{transform_indices = @transform_0, window_bounds = array<i64: 8, 768>}, {pipeline_mode = #tpu.pipeline_mode<synchronous>, transform_indices = @transform_1, window_bounds = array<i64: 768, 128>}, {pipeline_mode = #tpu.pipeline_mode<synchronous>, transform_indices = @transform_2, window_bounds = array<i64: 1, 128>}, {transform_indices = @transform_3, window_bounds = array<i64: 8, 128>}]} {
    %c0 = arith.constant 0 : index
    %c0_0 = arith.constant 0 : index
    %0 = vector.load %arg1[%c0, %c0_0] : memref<8x768xf32, #tpu.memory_space<vmem>>, vector<8x768xf32>
    %1 = arith.truncf %0 : vector<8x768xf32> to vector<8x768xbf16>
    %c0_1 = arith.constant 0 : index
    %c0_2 = arith.constant 0 : index
    %2 = vector.load %arg2[%c0_1, %c0_2] : memref<768x128xbf16, #tpu.memory_space<vmem>>, vector<768x128xbf16>
    %cst = arith.constant dense<0.000000e+00> : vector<8x128xf32>
    %3 = tpu.matmul %1, %2, %cst {dimension_numbers = #tpu.dot_dimension_numbers<[1], [0], [0], [1], [0, 0, 1, 1], [], []>} : vector<8x768xbf16>, vector<768x128xbf16>, vector<8x128xf32> -> vector<8x128xf32>
    %c0_3 = arith.constant 0 : index
    %c0_4 = arith.constant 0 : index
    %4 = vector.load %arg3[%c0_3, %c0_4] : memref<1x128xf32, #tpu.memory_space<vmem>>, vector<1x128xf32>
    %5 = vector.broadcast %4 : vector<1x128xf32> to vector<8x128xf32>
    %6 = arith.addf %3, %5 : vector<8x128xf32>
    %c0_5 = arith.constant 0 : index
    %c0_6 = arith.constant 0 : index
    %7 = vector.load %arg4[%c0_5, %c0_6] : memref<8x128xf32, #tpu.memory_space<vmem>>, vector<8x128xf32>
    tpu.vector_store %arg4[%c0_5, %c0_6], %6 {strides = array<i32>} : memref<8x128xf32, #tpu.memory_space<vmem>>, vector<8x128xf32>,
    return
  }
  func.func @transform_0(%arg0: i32) -> (i32, i32) {
    %c0_i32 = arith.constant 0 : i32
    %c0_i32_0 = arith.constant 0 : i32
    return %arg0, %c0_i32 : i32, i32
  }
  func.func @transform_1(%arg0: i32) -> (i32, i32) {
    %c0_i32 = arith.constant 0 : i32
    %c0_i32_0 = arith.constant 0 : i32
    %c0_i32_1 = arith.constant 0 : i32
    return %c0_i32, %c0_i32_0 : i32, i32
  }
  func.func @transform_2(%arg0: i32) -> (i32, i32) {
    %c0_i32 = arith.constant 0 : i32
    %c0_i32_0 = arith.constant 0 : i32
    %c0_i32_1 = arith.constant 0 : i32
    return %c0_i32, %c0_i32_0 : i32, i32
  }
  func.func @transform_3(%arg0: i32) -> (i32, i32) {
    %c0_i32 = arith.constant 0 : i32
    %c0_i32_0 = arith.constant 0 : i32
    return %arg0, %c0_i32 : i32, i32
  }
}

</mosaic_0001>

<llo_original>
// kernel: _mrl_apply.1
$region0: #{_mrl_apply.1}
  #allocation0 [shape = 'u32[]', space=smem, size = 0x4, offset = 0x4, fixed_abs, tag = 'smem constant byte address 0x4 - core index']
  #allocation1 [shape = 'u32[144,128]{1,0:T(1,128)}', space=vmem, size = 0x12000, scoped, tag = 'internal scratch']
  %s0 = inlined_call_operand.vmem [shape: f32[8,768], index: 0, kind: input, shape index: {}]
  %s1 = inlined_call_operand.hbm [shape: bf16[768,128], index: 1, kind: input, shape index: {}]
  %s2 = inlined_call_operand.vmem [shape: f32[1,128], index: 2, kind: input, shape index: {}]
  %s3 = inlined_call_operand.vmem [shape: f32[8,128], index: 3, kind: output, shape index: {}]
  %s4 = sld [smem:[#allocation0]]
  $region26: #{_mrl_apply.1} parent=0
    _
  %s6 = ssub.s32 1, %s4
  %s7 = scalar_select 0, %s6, %s4
  $region1: #{_mrl_apply.1} parent=0
    #allocation2 [shape = 'u8[196608]{0}', space=vmem, size = 0x30000, scoped, tag = 'input window, operand 1, single buffered']
    #allocation3 [shape = 's32[1]{0}', space=sflag, size = 0x4, scoped, tag = 'scoped memory for _mrl_apply.1']
    %8 = vsyncpa [#allocation3], 0
    // Predicated region
    $region2: #{_mrl_apply.1} parent=1 // pred_check
      _
    $region3: #{_mrl_apply.1} parent=1 // pred_check_branch
      %10 = sbr.rel (0) target = $region5
    $region4: #{_mrl_apply.1} parent=1 // pred_region
      _
    $region5: #{_mrl_apply.1} parent=1 // pred_fallthru
      _
    // Predicated region
    $region6: #{_mrl_apply.1} parent=1 // pred_check
      _
    $region7: #{_mrl_apply.1} parent=1 // pred_check_branch
      %12 = sbr.rel (0) target = $region9
    $region8: #{_mrl_apply.1} parent=1 // pred_region
      %s14 = ssub.s32 6144, 6144
      %15 = vsyncadd [#allocation3], %s14
      %s16 = sshll.u32 [#allocation2], 4
      %s17 = int_to_ptr.vmem [resolvable:$true] %s16
      %22 = dma.hbm_to_vmem [thread:$0]  %s1, 6144, %s17, [#allocation3], 64, 64, 4
    $region9: #{_mrl_apply.1} parent=1 // pred_fallthru
      _
    // Predicated region
    $region10: #{_mrl_apply.1} parent=1 // pred_check
      _
    $region11: #{_mrl_apply.1} parent=1 // pred_check_branch
      %24 = sbr.rel (0) target = $region13
    $region12: #{_mrl_apply.1} parent=1 // pred_region
      _
    $region13: #{_mrl_apply.1} parent=1 // pred_fallthru
      _
    // Predicated region
    $region14: #{_mrl_apply.1} parent=1 // pred_check
      _
    $region15: #{_mrl_apply.1} parent=1 // pred_check_branch
      %26 = sbr.rel (0) target = $region17
    $region16: #{_mrl_apply.1} parent=1 // pred_region
      %27 = dma.done [#allocation3], 6144
    $region17: #{_mrl_apply.1} parent=1 // pred_fallthru
      _
    %v29 = vld [vmem:[%s0] sm:$0xff]
    %v30 = vld [vmem:[%s0 + $0x8] sm:$0xff]
    %v31 = vld [vmem:[%s0 + $0x10] sm:$0xff]
    %v32 = vld [vmem:[%s0 + $0x18] sm:$0xff]
    %v33 = vld [vmem:[%s0 + $0x20] sm:$0xff]
    %v34 = vld [vmem:[%s0 + $0x28] sm:$0xff]
    %v35 = vpack.c.bf16 %v29, %v29
    %v36 = vpack.c.bf16 %v30, %v30
    %v37 = vpack.c.bf16 %v31, %v31
    %v38 = vpack.c.bf16 %v32, %v32
    %v39 = vpack.c.bf16 %v33, %v33
    %v40 = vpack.c.bf16 %v34, %v34
    %v41 = vld [vmem:[#allocation2] sm:$0xf]
    %v42 = vld [vmem:[#allocation2 + $0x4] sm:$0xf]
    %v43 = vld [vmem:[#allocation2 + $0x8] sm:$0xf]
    %v44 = vld [vmem:[#allocation2 + $0xc] sm:$0xf]
    %v45 = vld [vmem:[#allocation2 + $0x10] sm:$0xf]
    %v46 = vld [vmem:[#allocation2 + $0x14] sm:$0xf]
    %v47 = vld [vmem:[#allocation2 + $0x18] sm:$0xf]
    %v48 = vld [vmem:[#allocation2 + $0x1c] sm:$0xf]
    %v49 = vld [vmem:[#allocation2 + $0x20] sm:$0xf]
    %v50 = vld [vmem:[#allocation2 + $0x24] sm:$0xf]
    %v51 = vld [vmem:[#allocation2 + $0x28] sm:$0xf]
    %v52 = vld [vmem:[#allocation2 + $0x2c] sm:$0xf]
    %v53 = vld [vmem:[#allocation2 + $0x30] sm:$0xf]
    %v54 = vld [vmem:[#allocation2 + $0x34] sm:$0xf]
    %v55 = vld [vmem:[#allocation2 + $0x38] sm:$0xf]
    %v56 = vld [vmem:[#allocation2 + $0x3c] sm:$0xf]
    %v57 = vld [vmem:[#allocation2 + $0x40] sm:$0xf]
    %v58 = vld [vmem:[#allocation2 + $0x44] sm:$0xf]
    %v59 = vld [vmem:[#allocation2 + $0x48] sm:$0xf]
    %v60 = vld [vmem:[#allocation2 + $0x4c] sm:$0xf]
    %v61 = vld [vmem:[#allocation2 + $0x50] sm:$0xf]
    %v62 = vld [vmem:[#allocation2 + $0x54] sm:$0xf]
    %v63 = vld [vmem:[#allocation2 + $0x58] sm:$0xf]
    %v64 = vld [vmem:[#allocation2 + $0x5c] sm:$0xf]
    %v65 = vld [vmem:[#allocation2 + $0x60] sm:$0xf]
    %v66 = vld [vmem:[#allocation2 + $0x64] sm:$0xf]
    %v67 = vld [vmem:[#allocation2 + $0x68] sm:$0xf]
    %v68 = vld [vmem:[#allocation2 + $0x6c] sm:$0xf]
    %v69 = vld [vmem:[#allocation2 + $0x70] sm:$0xf]
    %v70 = vld [vmem:[#allocation2 + $0x74] sm:$0xf]
    %v71 = vld [vmem:[#allocation2 + $0x78] sm:$0xf]
    %v72 = vld [vmem:[#allocation2 + $0x7c] sm:$0xf]
    %v73 = vld [vmem:[#allocation2 + $0x80] sm:$0xf]
    %v74 = vld [vmem:[#allocation2 + $0x84] sm:$0xf]
    %v75 = vld [vmem:[#allocation2 + $0x88] sm:$0xf]
    %v76 = vld [vmem:[#allocation2 + $0x8c] sm:$0xf]
    %v77 = vld [vmem:[#allocation2 + $0x90] sm:$0xf]
    %v78 = vld [vmem:[#allocation2 + $0x94] sm:$0xf]
    %v79 = vld [vmem:[#allocation2 + $0x98] sm:$0xf]
    %v80 = vld [vmem:[#allocation2 + $0x9c] sm:$0xf]
    %v81 = vld [vmem:[#allocation2 + $0xa0] sm:$0xf]
    %v82 = vld [vmem:[#allocation2 + $0xa4] sm:$0xf]
    %v83 = vld [vmem:[#allocation2 + $0xa8] sm:$0xf]
    %v84 = vld [vmem:[#allocation2 + $0xac] sm:$0xf]
    %v85 = vld [vmem:[#allocation2 + $0xb0] sm:$0xf]
    %v86 = vld [vmem:[#allocation2 + $0xb4] sm:$0xf]
    %v87 = vld [vmem:[#allocation2 + $0xb8] sm:$0xf]
    %v88 = vld [vmem:[#allocation2 + $0xbc] sm:$0xf]
    %v89 = vld [vmem:[#allocation2 + $0xc0] sm:$0xf]
    %v90 = vld [vmem:[#allocation2 + $0xc4] sm:$0xf]
    %v91 = vld [vmem:[#allocation2 + $0xc8] sm:$0xf]
    %v92 = vld [vmem:[#allocation2 + $0xcc] sm:$0xf]
    %v93 = vld [vmem:[#allocation2 + $0xd0] sm:$0xf]
    %v94 = vld [vmem:[#allocation2 + $0xd4] sm:$0xf]
    %v95 = vld [vmem:[#allocation2 + $0xd8] sm:$0xf]
    %v96 = vld [vmem:[#allocation2 + $0xdc] sm:$0xf]
    %v97 = vld [vmem:[#allocation2 + $0xe0] sm:$0xf]
    %v98 = vld [vmem:[#allocation2 + $0xe4] sm:$0xf]
    %v99 = vld [vmem:[#allocation2 + $0xe8] sm:$0xf]
    %v100 = vld [vmem:[#allocation2 + $0xec] sm:$0xf]
    %v101 = vld [vmem:[#allocation2 + $0xf0] sm:$0xf]
    %v102 = vld [vmem:[#allocation2 + $0xf4] sm:$0xf]
    %v103 = vld [vmem:[#allocation2 + $0xf8] sm:$0xf]
    %v104 = vld [vmem:[#allocation2 + $0xfc] sm:$0xf]
    %v105 = vld [vmem:[#allocation2 + $0x100] sm:$0xf]
    %v106 = vld [vmem:[#allocation2 + $0x104] sm:$0xf]
    %v107 = vld [vmem:[#allocation2 + $0x108] sm:$0xf]
    %v108 = vld [vmem:[#allocation2 + $0x10c] sm:$0xf]
    %v109 = vld [vmem:[#allocation2 + $0x110] sm:$0xf]
    %v110 = vld [vmem:[#allocation2 + $0x114] sm:$0xf]
    %v111 = vld [vmem:[#allocation2 + $0x118] sm:$0xf]
    %v112 = vld [vmem:[#allocation2 + $0x11c] sm:$0xf]
    %v113 = vld [vmem:[#allocation2 + $0x120] sm:$0xf]
    %v114 = vld [vmem:[#allocation2 + $0x124] sm:$0xf]
    %v115 = vld [vmem:[#allocation2 + $0x128] sm:$0xf]
    %v116 = vld [vmem:[#allocation2 + $0x12c] sm:$0xf]
    %v117 = vld [vmem:[#allocation2 + $0x130] sm:$0xf]
    %v118 = vld [vmem:[#allocation2 + $0x134] sm:$0xf]
    %v119 = vld [vmem:[#allocation2 + $0x138] sm:$0xf]
    %v120 = vld [vmem:[#allocation2 + $0x13c] sm:$0xf]
    %v121 = vld [vmem:[#allocation2 + $0x140] sm:$0xf]
    %v122 = vld [vmem:[#allocation2 + $0x144] sm:$0xf]
    %v123 = vld [vmem:[#allocation2 + $0x148] sm:$0xf]
    %v124 = vld [vmem:[#allocation2 + $0x14c] sm:$0xf]
    %v125 = vld [vmem:[#allocation2 + $0x150] sm:$0xf]
    %v126 = vld [vmem:[#allocation2 + $0x154] sm:$0xf]
    %v127 = vld [vmem:[#allocation2 + $0x158] sm:$0xf]
    %v128 = vld [vmem:[#allocation2 + $0x15c] sm:$0xf]
    %v129 = vld [vmem:[#allocation2 + $0x160] sm:$0xf]
    %v130 = vld [vmem:[#allocation2 + $0x164] sm:$0xf]
    %v131 = vld [vmem:[#allocation2 + $0x168] sm:$0xf]
    %v132 = vld [vmem:[#allocation2 + $0x16c] sm:$0xf]
    %v133 = vld [vmem:[#allocation2 + $0x170] sm:$0xf]
    %v134 = vld [vmem:[#allocation2 + $0x174] sm:$0xf]
    %v135 = vld [vmem:[#allocation2 + $0x178] sm:$0xf]
    %v136 = vld [vmem:[#allocation2 + $0x17c] sm:$0xf]
    %v137 = vld [vmem:[%s2] sm:$0x1]
    %v139 = vlaneseq
    %v140 = vshrl.u32 %v139, 7
    %v141 = vsub.s32 0, %v140
    %v142 = vrot.slane %v137, %v141
    %v240 = vunpack.c.l.b16 %v41
    %v241 = vunpack.c.l.b16 %v42
    %v242 = vunpack.c.l.b16 %v43
    %v243 = vunpack.c.l.b16 %v44
    %v244 = vunpack.c.l.b16 %v45
    %v245 = vunpack.c.l.b16 %v46
    %v246 = vunpack.c.l.b16 %v47
    %v247 = vunpack.c.l.b16 %v48
    %v248 = vunpack.c.l.b16 %v49
    %v249 = vunpack.c.l.b16 %v50
    %v250 = vunpack.c.l.b16 %v51
    %v251 = vunpack.c.l.b16 %v52
    %v252 = vunpack.c.l.b16 %v53
    %v253 = vunpack.c.l.b16 %v54
    %v254 = vunpack.c.l.b16 %v55
    %v255 = vunpack.c.l.b16 %v56
    %v256 = vunpack.c.l.b16 %v57
    %v257 = vunpack.c.l.b16 %v58
    %v258 = vunpack.c.l.b16 %v59
    %v259 = vunpack.c.l.b16 %v60
    %v260 = vunpack.c.l.b16 %v61
    %v261 = vunpack.c.l.b16 %v62
    %v262 = vunpack.c.l.b16 %v63
    %v263 = vunpack.c.l.b16 %v64
    %v264 = vunpack.c.l.b16 %v65
    %v265 = vunpack.c.l.b16 %v66
    %v266 = vunpack.c.l.b16 %v67
    %v267 = vunpack.c.l.b16 %v68
    %v268 = vunpack.c.l.b16 %v69
    %v269 = vunpack.c.l.b16 %v70
    %v270 = vunpack.c.l.b16 %v71
    %v271 = vunpack.c.l.b16 %v72
    %v272 = vunpack.c.l.b16 %v73
    %v273 = vunpack.c.l.b16 %v74
    %v274 = vunpack.c.l.b16 %v75
    %v275 = vunpack.c.l.b16 %v76
    %v276 = vunpack.c.l.b16 %v77
    %v277 = vunpack.c.l.b16 %v78
    %v278 = vunpack.c.l.b16 %v79
    %v279 = vunpack.c.l.b16 %v80
    %v280 = vunpack.c.l.b16 %v81
    %v281 = vunpack.c.l.b16 %v82
    %v282 = vunpack.c.l.b16 %v83
    %v283 = vunpack.c.l.b16 %v84
    %v284 = vunpack.c.l.b16 %v85
    %v285 = vunpack.c.l.b16 %v86
    %v286 = vunpack.c.l.b16 %v87
    %v287 = vunpack.c.l.b16 %v88
    %v288 = vunpack.c.l.b16 %v89
    %v289 = vunpack.c.l.b16 %v90
    %v290 = vunpack.c.l.b16 %v91
    %v291 = vunpack.c.l.b16 %v92
    %v292 = vunpack.c.l.b16 %v93
    %v293 = vunpack.c.l.b16 %v94
    %v294 = vunpack.c.l.b16 %v95
    %v295 = vunpack.c.l.b16 %v96
    %v296 = vunpack.c.l.b16 %v97
    %v297 = vunpack.c.l.b16 %v98
    %v298 = vunpack.c.l.b16 %v99
    %v299 = vunpack.c.l.b16 %v100
    %v300 = vunpack.c.l.b16 %v101
    %v301 = vunpack.c.l.b16 %v102
    %v302 = vunpack.c.l.b16 %v103
    %v303 = vunpack.c.l.b16 %v104
    %v304 = vunpack.c.l.b16 %v105
    %v305 = vunpack.c.l.b16 %v106
    %v306 = vunpack.c.l.b16 %v107
    %v307 = vunpack.c.l.b16 %v108
    %v308 = vunpack.c.l.b16 %v109
    %v309 = vunpack.c.l.b16 %v110
    %v310 = vunpack.c.l.b16 %v111
    %v311 = vunpack.c.l.b16 %v112
    %v312 = vunpack.c.l.b16 %v113
    %v313 = vunpack.c.l.b16 %v114
    %v314 = vunpack.c.l.b16 %v115
    %v315 = vunpack.c.l.b16 %v116
    %v316 = vunpack.c.l.b16 %v117
    %v317 = vunpack.c.l.b16 %v118
    %v318 = vunpack.c.l.b16 %v119
    %v319 = vunpack.c.l.b16 %v120
    %v320 = vunpack.c.l.b16 %v121
    %v321 = vunpack.c.l.b16 %v122
    %v322 = vunpack.c.l.b16 %v123
    %v323 = vunpack.c.l.b16 %v124
    %v324 = vunpack.c.l.b16 %v125
    %v325 = vunpack.c.l.b16 %v126
    %v326 = vunpack.c.l.b16 %v127
    %v327 = vunpack.c.l.b16 %v128
    %v328 = vunpack.c.l.b16 %v129
    %v329 = vunpack.c.l.b16 %v130
    %v330 = vunpack.c.l.b16 %v131
    %v331 = vunpack.c.l.b16 %v132
    %v332 = vunpack.c.l.b16 %v133
    %v333 = vunpack.c.l.b16 %v134
    %v334 = vunpack.c.l.b16 %v135
    %v335 = vunpack.c.l.b16 %v136
    %v336 = vpack.c.b16 %v241, %v240
    %v337 = vpack.c.b16 %v243, %v242
    %v338 = vpack.c.b16 %v245, %v244
    %v339 = vpack.c.b16 %v247, %v246
    %v340 = vpack.c.b16 %v249, %v248
    %v341 = vpack.c.b16 %v251, %v250
    %v342 = vpack.c.b16 %v253, %v252
    %v343 = vpack.c.b16 %v255, %v254
    %v344 = vpack.c.b16 %v257, %v256
    %v345 = vpack.c.b16 %v259, %v258
    %v346 = vpack.c.b16 %v261, %v260
    %v347 = vpack.c.b16 %v263, %v262
    %v348 = vpack.c.b16 %v265, %v264
    %v349 = vpack.c.b16 %v267, %v266
    %v350 = vpack.c.b16 %v269, %v268
    %v351 = vpack.c.b16 %v271, %v270
    %v352 = vpack.c.b16 %v273, %v272
    %v353 = vpack.c.b16 %v275, %v274
    %v354 = vpack.c.b16 %v277, %v276
    %v355 = vpack.c.b16 %v279, %v278
    %v356 = vpack.c.b16 %v281, %v280
    %v357 = vpack.c.b16 %v283, %v282
    %v358 = vpack.c.b16 %v285, %v284
    %v359 = vpack.c.b16 %v287, %v286
    %v360 = vpack.c.b16 %v289, %v288
    %v361 = vpack.c.b16 %v291, %v290
    %v362 = vpack.c.b16 %v293, %v292
    %v363 = vpack.c.b16 %v295, %v294
    %v364 = vpack.c.b16 %v297, %v296
    %v365 = vpack.c.b16 %v299, %v298
    %v366 = vpack.c.b16 %v301, %v300
    %v367 = vpack.c.b16 %v303, %v302
    %v368 = vpack.c.b16 %v305, %v304
    %v369 = vpack.c.b16 %v307, %v306
    %v370 = vpack.c.b16 %v309, %v308
    %v371 = vpack.c.b16 %v311, %v310
    %v372 = vpack.c.b16 %v313, %v312
    %v373 = vpack.c.b16 %v315, %v314
    %v374 = vpack.c.b16 %v317, %v316
    %v375 = vpack.c.b16 %v319, %v318
    %v376 = vpack.c.b16 %v321, %v320
    %v377 = vpack.c.b16 %v323, %v322
    %v378 = vpack.c.b16 %v325, %v324
    %v379 = vpack.c.b16 %v327, %v326
    %v380 = vpack.c.b16 %v329, %v328
    %v381 = vpack.c.b16 %v331, %v330
    %v382 = vpack.c.b16 %v333, %v332
    %v383 = vpack.c.b16 %v335, %v334
    %432 = vmatprep.subr.bf16.mxu0 0
    %433 = vmatpush1.bf16.msra.mxu0 %v336
    %434 = vmatprep.subr.bf16.mxu0 0
    %435 = vmatpush1.bf16.msra.mxu0 %v337
    %436 = vmatprep.subr.bf16.mxu0 0
    %437 = vmatpush1.bf16.msra.mxu0 %v338
    %438 = vmatprep.subr.bf16.mxu0 0
    %439 = vmatpush1.bf16.msra.mxu0 %v339
    %440 = vmatprep.subr.bf16.mxu0 0
    %441 = vmatpush1.bf16.msra.mxu0 %v340
    %442 = vmatprep.subr.bf16.mxu0 0
    %443 = vmatpush1.bf16.msra.mxu0 %v341
    %444 = vmatprep.subr.bf16.mxu0 0
    %445 = vmatpush1.bf16.msra.mxu0 %v342
    %446 = vmatprep.subr.bf16.mxu0 0
    %447 = vmatpush1.bf16.msra.mxu0 %v343
    %448 = vmatprep.subr.bf16.mxu0 0
    %449 = vmatpush1.bf16.msra.mxu0 %v344
    %450 = vmatprep.subr.bf16.mxu0 0
    %451 = vmatpush1.bf16.msra.mxu0 %v345
    %452 = vmatprep.subr.bf16.mxu0 0
    %453 = vmatpush1.bf16.msra.mxu0 %v346
    %454 = vmatprep.subr.bf16.mxu0 0
    %455 = vmatpush1.bf16.msra.mxu0 %v347
    %456 = vmatprep.subr.bf16.mxu0 0
    %457 = vmatpush1.bf16.msra.mxu0 %v348
    %458 = vmatprep.subr.bf16.mxu0 0
    %459 = vmatpush1.bf16.msra.mxu0 %v349
    %460 = vmatprep.subr.bf16.mxu0 0
    %461 = vmatpush1.bf16.msra.mxu0 %v350
    %462 = vmatprep.subr.bf16.mxu0 0
    %463 = vmatpush1.bf16.msra.mxu0 %v351
    %464 = vmatprep.mubr.bf16.mxu0 %v36
    %465 = vmatmul.mubr.bf16.gmra.mrb[0].mxu0 %v35
    %v466 = vpop.f32.mrb[0].mxu0
    %v467 = vadd.f32 %v142, %v466
    %v468 = vpop.f32.mrb[0].mxu0
    %v469 = vpop.f32.mrb[0].mxu0
    %v470 = vpop.f32.mrb[0].mxu0
    %471 = vdwg.mxu0
    %472 = vmatprep.subr.bf16.mxu0 0
    %473 = vmatpush1.bf16.msra.mxu0 %v352
    %474 = vmatprep.subr.bf16.mxu0 0
    %475 = vmatpush1.bf16.msra.mxu0 %v353
    %476 = vmatprep.subr.bf16.mxu0 0
    %477 = vmatpush1.bf16.msra.mxu0 %v354
    %478 = vmatprep.subr.bf16.mxu0 0
    %479 = vmatpush1.bf16.msra.mxu0 %v355
    %480 = vmatprep.subr.bf16.mxu0 0
    %481 = vmatpush1.bf16.msra.mxu0 %v356
    %482 = vmatprep.subr.bf16.mxu0 0
    %483 = vmatpush1.bf16.msra.mxu0 %v357
    %484 = vmatprep.subr.bf16.mxu0 0
    %485 = vmatpush1.bf16.msra.mxu0 %v358
    %486 = vmatprep.subr.bf16.mxu0 0
    %487 = vmatpush1.bf16.msra.mxu0 %v359
    %488 = vmatprep.subr.bf16.mxu0 0
    %489 = vmatpush1.bf16.msra.mxu0 %v360
    %490 = vmatprep.subr.bf16.mxu0 0
    %491 = vmatpush1.bf16.msra.mxu0 %v361
    %492 = vmatprep.subr.bf16.mxu0 0
    %493 = vmatpush1.bf16.msra.mxu0 %v362
    %494 = vmatprep.subr.bf16.mxu0 0
    %495 = vmatpush1.bf16.msra.mxu0 %v363
    %496 = vmatprep.subr.bf16.mxu0 0
    %497 = vmatpush1.bf16.msra.mxu0 %v364
    %498 = vmatprep.subr.bf16.mxu0 0
    %499 = vmatpush1.bf16.msra.mxu0 %v365
    %500 = vmatprep.subr.bf16.mxu0 0
    %501 = vmatpush1.bf16.msra.mxu0 %v366
    %502 = vmatprep.subr.bf16.mxu0 0
    %503 = vmatpush1.bf16.msra.mxu0 %v367
    %504 = vmatprep.mubr.bf16.mxu0 %v38
    %505 = vmatmul.mubr.bf16.gmra.mrb[0].mxu0 %v37
    %v506 = vpop.f32.mrb[0].mxu0
    %v507 = vadd.f32 %v467, %v506
    %v508 = vpop.f32.mrb[0].mxu0
    %v509 = vpop.f32.mrb[0].mxu0
    %v510 = vpop.f32.mrb[0].mxu0
    %511 = vdwg.mxu0
    %512 = vmatprep.subr.bf16.mxu0 0
    %513 = vmatpush1.bf16.msra.mxu0 %v368
    %514 = vmatprep.subr.bf16.mxu0 0
    %515 = vmatpush1.bf16.msra.mxu0 %v369
    %516 = vmatprep.subr.bf16.mxu0 0
    %517 = vmatpush1.bf16.msra.mxu0 %v370
    %518 = vmatprep.subr.bf16.mxu0 0
    %519 = vmatpush1.bf16.msra.mxu0 %v371
    %520 = vmatprep.subr.bf16.mxu0 0
    %521 = vmatpush1.bf16.msra.mxu0 %v372
    %522 = vmatprep.subr.bf16.mxu0 0
    %523 = vmatpush1.bf16.msra.mxu0 %v373
    %524 = vmatprep.subr.bf16.mxu0 0
    %525 = vmatpush1.bf16.msra.mxu0 %v374
    %526 = vmatprep.subr.bf16.mxu0 0
    %527 = vmatpush1.bf16.msra.mxu0 %v375
    %528 = vmatprep.subr.bf16.mxu0 0
    %529 = vmatpush1.bf16.msra.mxu0 %v376
    %530 = vmatprep.subr.bf16.mxu0 0
    %531 = vmatpush1.bf16.msra.mxu0 %v377
    %532 = vmatprep.subr.bf16.mxu0 0
    %533 = vmatpush1.bf16.msra.mxu0 %v378
    %534 = vmatprep.subr.bf16.mxu0 0
    %535 = vmatpush1.bf16.msra.mxu0 %v379
    %536 = vmatprep.subr.bf16.mxu0 0
    %537 = vmatpush1.bf16.msra.mxu0 %v380
    %538 = vmatprep.subr.bf16.mxu0 0
    %539 = vmatpush1.bf16.msra.mxu0 %v381
    %540 = vmatprep.subr.bf16.mxu0 0
    %541 = vmatpush1.bf16.msra.mxu0 %v382
    %542 = vmatprep.subr.bf16.mxu0 0
    %543 = vmatpush1.bf16.msra.mxu0 %v383
    %544 = vmatprep.mubr.bf16.mxu0 %v40
    %545 = vmatmul.mubr.bf16.gmra.mrb[0].mxu0 %v39
    %v546 = vpop.f32.mrb[0].mxu0
    %v547 = vadd.f32 %v507, %v546
    %v548 = vpop.f32.mrb[0].mxu0
    %v549 = vpop.f32.mrb[0].mxu0
    %v550 = vpop.f32.mrb[0].mxu0
    %551 = vdwg.mxu0
    %552 = vst [vmem:[%s3] sm:$0xff] %v547
    // Predicated region
    $region18: #{_mrl_apply.1} parent=1 // pred_check
      _
    $region19: #{_mrl_apply.1} parent=1 // pred_check_branch
      %554 = sbr.rel (0) target = $region21
    $region20: #{_mrl_apply.1} parent=1 // pred_region
      _
    $region21: #{_mrl_apply.1} parent=1 // pred_fallthru
      _
    // Predicated region
    $region22: #{_mrl_apply.1} parent=1 // pred_check
      _
    $region23: #{_mrl_apply.1} parent=1 // pred_check_branch
      %556 = sbr.rel (0) target = $region25
    $region24: #{_mrl_apply.1} parent=1 // pred_region
      _
    $region25: #{_mrl_apply.1} parent=1 // pred_fallthru
      _
    %557 = vsyncpa [#allocation3], 1

</llo_original>
